<compile_context>
chip_gen: v5e
topology: v5e:2x2
jax: 0.10.0
libtpu: 0.0.40
codegen_flags: <defaults>
</compile_context>

<pallas_src>
import functools

import jax
import jax.numpy as jnp
from jax.experimental import pallas as pl
from jax.experimental.pallas import tpu as pltpu


def _round_up(x, m):
    return ((x + m - 1) // m) * m


def _hardswish(x):
    # PyTorch nn.Hardswish definition.
    return x * jnp.clip(x + 3.0, 0.0, 6.0) * (1.0 / 6.0)


def critic_twin_kernel(
    state_ref, action_ref,          # [TB, S] f32, [TB, A] f32
    w0s_ref, w0a_ref, b0_ref,       # [S, MP] bf16, [A, MP] bf16, [1, MP] f32
    w1_ref, b1_ref,                 # [MP, MP] bf16, [1, MP] f32
    w2_ref, b2_ref,                 # [MP, MP] bf16, [1, MP] f32
    wq1_ref, bq1_ref,               # [MP, MP] bf16, [1, MP] f32
    wq2_ref, bq2_ref,               # [1, MP] f32,  [1, 1] f32
    out_ref,                        # [TB, 1] f32
):
    # Fused concat: cat(state, action) @ W0 == state @ W0[:S] + action @ W0[S:].
    s_bf = state_ref[...].astype(jnp.bfloat16)
    a_bf = action_ref[...].astype(jnp.bfloat16)
    h = (
        jnp.dot(s_bf, w0s_ref[...], preferred_element_type=jnp.float32)
        + jnp.dot(a_bf, w0a_ref[...], preferred_element_type=jnp.float32)
        + b0_ref[...]
    )
    h = jnp.maximum(h, 0.0)                                           # ReLU

    h = jnp.dot(h.astype(jnp.bfloat16), w1_ref[...],
                preferred_element_type=jnp.float32) + b1_ref[...]
    h = jnp.maximum(h, 0.0)                                           # ReLU

    h = jnp.dot(h.astype(jnp.bfloat16), w2_ref[...],
                preferred_element_type=jnp.float32) + b2_ref[...]
    h = jnp.maximum(h, 0.0)                                           # ReLU

    g = jnp.dot(h.astype(jnp.bfloat16), wq1_ref[...],
                preferred_element_type=jnp.float32) + bq1_ref[...]
    g = _hardswish(g)                                                 # Hardswish

    # Final Linear(M -> 1): VPU broadcast-multiply + lane reduce instead of an
    # N=1 MXU matmul (avoids a near-empty MXU pass / single-column result pop).
    q = jnp.sum(g * wq2_ref[...], axis=-1, keepdims=True) + bq2_ref[...]
    out_ref[...] = q.astype(out_ref.dtype)


@functools.partial(jax.jit, static_argnames=("block_rows",))
def critic_twin_forward(state, action, params, *, block_rows=512):
    """state: [B, state_dim] f32, action: [B, action_dim] f32 -> q1: [B, 1] f32."""
    B, S = state.shape
    A = action.shape[1]
    MP = params["w1"].shape[0]          # lane-padded hidden dim (multiple of 128)

    tb = min(block_rows, _round_up(B, 8))
    grid = (pl.cdiv(B, tb),)

    def row_spec(cols):                 # batch-tiled activations
        return pl.BlockSpec((tb, cols), lambda i: (i, 0))

    def const_spec(shape):              # weights/biases: VMEM-resident, fetched once
        return pl.BlockSpec(shape, lambda i: (0, 0))

    in_specs = [
        row_spec(S),
        row_spec(A),
        const_spec((S, MP)), const_spec((A, MP)), const_spec((1, MP)),
        const_spec((MP, MP)), const_spec((1, MP)),
        const_spec((MP, MP)), const_spec((1, MP)),
        const_spec((MP, MP)), const_spec((1, MP)),
        const_spec((1, MP)), const_spec((1, 1)),
    ]
    out_spec = pl.BlockSpec((tb, 1), lambda i: (i, 0))

    # VMEM budget: resident weights + double-buffered io tiles + live f32
    # activations, with headroom; clamped below v7x's 64 MiB physical VMEM.
    bf16, f32 = 2, 4
    weight_bytes = (S + A + 3 * MP) * MP * bf16 + (5 * MP + MP + 1) * f32
    io_bytes = 2 * (tb * (S + A) * f32 + tb * f32)
    act_bytes = 6 * tb * MP * f32
    vmem_limit = int(min(max(32 << 20, 2 * (weight_bytes + io_bytes + act_bytes)),
                         48 << 20))

    flops = 2 * B * ((S + A) * MP + 3 * MP * MP) + 8 * B * MP
    bytes_accessed = B * (S + A + 1) * f32 + weight_bytes

    return pl.pallas_call(
        critic_twin_kernel,
        out_shape=jax.ShapeDtypeStruct((B, 1), jnp.float32),
        grid=grid,
        in_specs=in_specs,
        out_specs=out_spec,
        compiler_params=pltpu.CompilerParams(
            dimension_semantics=("parallel",),
            vmem_limit_bytes=vmem_limit,
        ),
        cost_estimate=pl.CostEstimate(
            flops=flops, transcendentals=0, bytes_accessed=bytes_accessed),
    )(
        state, action,
        params["w0s"], params["w0a"], params["b0"],
        params["w1"], params["b1"],
        params["w2"], params["b2"],
        params["wq1"], params["bq1"],
        params["wq2"], params["bq2"],
    )


def init_params(key, state_dim, action_dim, mid_dim, lane_pad=128):
    """Deterministic PyTorch-default-style weights for CriticTwin (if_use_dn=False).

    Returns (kernel_params, reference_params):
      kernel_params: pre-transposed [in, out], first layer split at state_dim,
                     hidden dim zero-padded to a multiple of `lane_pad`,
                     matmul weights in bf16 (kernel accumulates in f32).
      reference_params: the unpadded f32 logical weights.
    """
    ks = jax.random.split(key, 10)
    sa = state_dim + action_dim
    MP = _round_up(mid_dim, lane_pad)

    def lin(kw, kb, fan_in, fan_out):
        bound = float(fan_in) ** -0.5
        w = jax.random.uniform(kw, (fan_in, fan_out), jnp.float32, -bound, bound)
        b = jax.random.uniform(kb, (1, fan_out), jnp.float32, -bound, bound)
        return w, b

    w0, b0 = lin(ks[0], ks[1], sa, mid_dim)        # net_sa Linear
    w1, b1 = lin(ks[2], ks[3], mid_dim, mid_dim)   # nn_middle Linear 1
    w2, b2 = lin(ks[4], ks[5], mid_dim, mid_dim)   # nn_middle Linear 2
    wq1, bq1 = lin(ks[6], ks[7], mid_dim, mid_dim)  # net_q1 Linear 1
    wq2, bq2 = lin(ks[8], ks[9], mid_dim, 1)        # net_q1 Linear 2

    ref = dict(w0=w0, b0=b0, w1=w1, b1=b1, w2=w2, b2=b2,
               wq1=wq1, bq1=bq1, wq2=wq2, bq2=bq2)

    def pad_cols(w):
        return jnp.pad(w, ((0, 0), (0, MP - w.shape[1])))

    def pad_both(w):
        return jnp.pad(w, ((0, MP - w.shape[0]), (0, MP - w.shape[1])))

    p = {
        "w0s": pad_cols(w0[:state_dim]).astype(jnp.bfloat16),
        "w0a": pad_cols(w0[state_dim:]).astype(jnp.bfloat16),
        "b0": pad_cols(b0),
        "w1": pad_both(w1).astype(jnp.bfloat16),
        "b1": pad_cols(b1),
        "w2": pad_both(w2).astype(jnp.bfloat16),
        "b2": pad_cols(b2),
        "wq1": pad_both(wq1).astype(jnp.bfloat16),
        "bq1": pad_cols(bq1),
        # Final layer as a [1, MP] row for the in-kernel VPU reduce (kept f32).
        "wq2": jnp.pad(wq2.T, ((0, 0), (0, MP - mid_dim))),
        "bq2": bq2,                                  # [1, 1]
    }
    return p, ref


def reference_forward(state, action, p):
    """Pure-JAX f32 reference of CriticTwin.forward (if_use_dn=False)."""
    x = jnp.concatenate([state, action], axis=1)
    h = jnp.maximum(x @ p["w0"] + p["b0"], 0.0)
    h = jnp.maximum(h @ p["w1"] + p["b1"], 0.0)
    h = jnp.maximum(h @ p["w2"] + p["b2"], 0.0)
    g = _hardswish(h @ p["wq1"] + p["bq1"])
    return g @ p["wq2"] + p["bq2"]


if __name__ == "__main__":
    B, state_dim, action_dim, mid_dim = 8, 12, 4, 32

    key = jax.random.PRNGKey(0)
    k_state, k_action, k_params = jax.random.split(key, 3)

    state = jax.random.normal(k_state, (B, state_dim), jnp.float32)
    action = jax.random.normal(k_action, (B, action_dim), jnp.float32)
    params, ref_params = init_params(k_params, state_dim, action_dim, mid_dim)

    q1 = critic_twin_forward(state, action, params)
    q1 = jax.block_until_ready(q1)
    q1_ref = reference_forward(state, action, ref_params)

    assert q1.shape == (B, 1)
    assert bool(jnp.all(jnp.isfinite(q1)))
    # bf16 matmul inputs w/ f32 accumulation vs. pure-f32 reference.
    assert jnp.allclose(q1, q1_ref, atol=2e-2, rtol=2e-2), float(
        jnp.max(jnp.abs(q1 - q1_ref)))

    # Second check: exercise the batch grid (multiple tiles + ragged tail).
    B2 = 300
    k_s2, k_a2 = jax.random.split(jax.random.PRNGKey(1), 2)
    state2 = jax.random.normal(k_s2, (B2, state_dim), jnp.float32)
    action2 = jax.random.normal(k_a2, (B2, action_dim), jnp.float32)
    q2 = jax.block_until_ready(
        critic_twin_forward(state2, action2, params, block_rows=128))
    q2_ref = reference_forward(state2, action2, ref_params)
    assert q2.shape == (B2, 1)
    assert jnp.allclose(q2, q2_ref, atol=2e-2, rtol=2e-2), float(
        jnp.max(jnp.abs(q2 - q2_ref)))

    # TODO(synk): net_q2 / get_q1_q2 and the if_use_dn=True DenseNet branch are
    # not part of CriticTwin.forward and are not implemented here.
    print("KERNEL_OK")
</pallas_src>

<mosaic_0001>
module attributes {stable_mosaic.version = 11 : i64} {
  func.func @critic_twin_kernel(%arg0: i32, %arg1: memref<8x12xf32, #tpu.memory_space<vmem>>, %arg2: memref<8x4xf32, #tpu.memory_space<vmem>>, %arg3: memref<12x128xbf16, #tpu.memory_space<vmem>>, %arg4: memref<4x128xbf16, #tpu.memory_space<vmem>>, %arg5: memref<1x128xf32, #tpu.memory_space<vmem>>, %arg6: memref<128x128xbf16, #tpu.memory_space<vmem>>, %arg7: memref<1x128xf32, #tpu.memory_space<vmem>>, %arg8: memref<128x128xbf16, #tpu.memory_space<vmem>>, %arg9: memref<1x128xf32, #tpu.memory_space<vmem>>, %arg10: memref<128x128xbf16, #tpu.memory_space<vmem>>, %arg11: memref<1x128xf32, #tpu.memory_space<vmem>>, %arg12: memref<1x128xf32, #tpu.memory_space<vmem>>, %arg13: memref<1x1xf32, #tpu.memory_space<vmem>>, %arg14: memref<8x1xf32, #tpu.memory_space<vmem>>) attributes {dimension_semantics = [#tpu.dimension_semantics<parallel>], iteration_bounds = array<i64: 1>, scalar_prefetch = 0 : i64, scratch_operands = 0 : i64, tpu.core_type = #tpu.core_type<tc>, window_params = [{transform_indices = @transform_0, window_bounds = array<i64: 8, 12>}, {transform_indices = @transform_1, window_bounds = array<i64: 8, 4>}, {pipeline_mode = #tpu.pipeline_mode<synchronous>, transform_indices = @transform_2, window_bounds = array<i64: 12, 128>}, {pipeline_mode = #tpu.pipeline_mode<synchronous>, transform_indices = @transform_3, window_bounds = array<i64: 4, 128>}, {pipeline_mode = #tpu.pipeline_mode<synchronous>, transform_indices = @transform_4, window_bounds = array<i64: 1, 128>}, {pipeline_mode = #tpu.pipeline_mode<synchronous>, transform_indices = @transform_5, window_bounds = array<i64: 128, 128>}, {pipeline_mode = #tpu.pipeline_mode<synchronous>, transform_indices = @transform_6, window_bounds = array<i64: 1, 128>}, {pipeline_mode = #tpu.pipeline_mode<synchronous>, transform_indices = @transform_7, window_bounds = array<i64: 128, 128>}, {pipeline_mode = #tpu.pipeline_mode<synchronous>, transform_indices = @transform_8, window_bounds = array<i64: 1, 128>}, {pipeline_mode = #tpu.pipeline_mode<synchronous>, transform_indices = @transform_9, window_bounds = array<i64: 128, 128>}, {pipeline_mode = #tpu.pipeline_mode<synchronous>, transform_indices = @transform_10, window_bounds = array<i64: 1, 128>}, {pipeline_mode = #tpu.pipeline_mode<synchronous>, transform_indices = @transform_11, window_bounds = array<i64: 1, 128>}, {pipeline_mode = #tpu.pipeline_mode<synchronous>, transform_indices = @transform_12, window_bounds = array<i64: 1, 1>}, {transform_indices = @transform_13, window_bounds = array<i64: 8, 1>}]} {
    %c0 = arith.constant 0 : index
    %c0_0 = arith.constant 0 : index
    %0 = vector.load %arg1[%c0, %c0_0] : memref<8x12xf32, #tpu.memory_space<vmem>>, vector<8x12xf32>
    %1 = arith.truncf %0 : vector<8x12xf32> to vector<8x12xbf16>
    %c0_1 = arith.constant 0 : index
    %c0_2 = arith.constant 0 : index
    %2 = vector.load %arg2[%c0_1, %c0_2] : memref<8x4xf32, #tpu.memory_space<vmem>>, vector<8x4xf32>
    %3 = arith.truncf %2 : vector<8x4xf32> to vector<8x4xbf16>
    %c0_3 = arith.constant 0 : index
    %c0_4 = arith.constant 0 : index
    %4 = vector.load %arg3[%c0_3, %c0_4] : memref<12x128xbf16, #tpu.memory_space<vmem>>, vector<12x128xbf16>
    %cst = arith.constant dense<0.000000e+00> : vector<8x128xf32>
    %5 = tpu.matmul %1, %4, %cst {dimension_numbers = #tpu.dot_dimension_numbers<[1], [0], [0], [1], [0, 0, 1, 1], [], []>} : vector<8x12xbf16>, vector<12x128xbf16>, vector<8x128xf32> -> vector<8x128xf32>
    %c0_5 = arith.constant 0 : index
    %c0_6 = arith.constant 0 : index
    %6 = vector.load %arg4[%c0_5, %c0_6] : memref<4x128xbf16, #tpu.memory_space<vmem>>, vector<4x128xbf16>
    %cst_7 = arith.constant dense<0.000000e+00> : vector<8x128xf32>
    %7 = tpu.matmul %3, %6, %cst_7 {dimension_numbers = #tpu.dot_dimension_numbers<[1], [0], [0], [1], [0, 0, 1, 1], [], []>} : vector<8x4xbf16>, vector<4x128xbf16>, vector<8x128xf32> -> vector<8x128xf32>
    %8 = arith.addf %5, %7 : vector<8x128xf32>
    %c0_8 = arith.constant 0 : index
    %c0_9 = arith.constant 0 : index
    %9 = vector.load %arg5[%c0_8, %c0_9] : memref<1x128xf32, #tpu.memory_space<vmem>>, vector<1x128xf32>
    %10 = vector.broadcast %9 : vector<1x128xf32> to vector<8x128xf32>
    %11 = arith.addf %8, %10 : vector<8x128xf32>
    %cst_10 = arith.constant 0.000000e+00 : f32
    %12 = vector.broadcast %cst_10 : f32 to vector<8x128xf32>
    %13 = arith.maximumf %11, %12 : vector<8x128xf32>
    %14 = arith.truncf %13 : vector<8x128xf32> to vector<8x128xbf16>
    %c0_11 = arith.constant 0 : index
    %c0_12 = arith.constant 0 : index
    %15 = vector.load %arg6[%c0_11, %c0_12] : memref<128x128xbf16, #tpu.memory_space<vmem>>, vector<128x128xbf16>
    %cst_13 = arith.constant dense<0.000000e+00> : vector<8x128xf32>
    %16 = tpu.matmul %14, %15, %cst_13 {dimension_numbers = #tpu.dot_dimension_numbers<[1], [0], [0], [1], [0, 0, 1, 1], [], []>} : vector<8x128xbf16>, vector<128x128xbf16>, vector<8x128xf32> -> vector<8x128xf32>
    %c0_14 = arith.constant 0 : index
    %c0_15 = arith.constant 0 : index
    %17 = vector.load %arg7[%c0_14, %c0_15] : memref<1x128xf32, #tpu.memory_space<vmem>>, vector<1x128xf32>
    %18 = vector.broadcast %17 : vector<1x128xf32> to vector<8x128xf32>
    %19 = arith.addf %16, %18 : vector<8x128xf32>
    %cst_16 = arith.constant 0.000000e+00 : f32
    %20 = vector.broadcast %cst_16 : f32 to vector<8x128xf32>
    %21 = arith.maximumf %19, %20 : vector<8x128xf32>
    %22 = arith.truncf %21 : vector<8x128xf32> to vector<8x128xbf16>
    %c0_17 = arith.constant 0 : index
    %c0_18 = arith.constant 0 : index
    %23 = vector.load %arg8[%c0_17, %c0_18] : memref<128x128xbf16, #tpu.memory_space<vmem>>, vector<128x128xbf16>
    %cst_19 = arith.constant dense<0.000000e+00> : vector<8x128xf32>
    %24 = tpu.matmul %22, %23, %cst_19 {dimension_numbers = #tpu.dot_dimension_numbers<[1], [0], [0], [1], [0, 0, 1, 1], [], []>} : vector<8x128xbf16>, vector<128x128xbf16>, vector<8x128xf32> -> vector<8x128xf32>
    %c0_20 = arith.constant 0 : index
    %c0_21 = arith.constant 0 : index
    %25 = vector.load %arg9[%c0_20, %c0_21] : memref<1x128xf32, #tpu.memory_space<vmem>>, vector<1x128xf32>
    %26 = vector.broadcast %25 : vector<1x128xf32> to vector<8x128xf32>
    %27 = arith.addf %24, %26 : vector<8x128xf32>
    %cst_22 = arith.constant 0.000000e+00 : f32
    %28 = vector.broadcast %cst_22 : f32 to vector<8x128xf32>
    %29 = arith.maximumf %27, %28 : vector<8x128xf32>
    %30 = arith.truncf %29 : vector<8x128xf32> to vector<8x128xbf16>
    %c0_23 = arith.constant 0 : index
    %c0_24 = arith.constant 0 : index
    %31 = vector.load %arg10[%c0_23, %c0_24] : memref<128x128xbf16, #tpu.memory_space<vmem>>, vector<128x128xbf16>
    %cst_25 = arith.constant dense<0.000000e+00> : vector<8x128xf32>
    %32 = tpu.matmul %30, %31, %cst_25 {dimension_numbers = #tpu.dot_dimension_numbers<[1], [0], [0], [1], [0, 0, 1, 1], [], []>} : vector<8x128xbf16>, vector<128x128xbf16>, vector<8x128xf32> -> vector<8x128xf32>
    %c0_26 = arith.constant 0 : index
    %c0_27 = arith.constant 0 : index
    %33 = vector.load %arg11[%c0_26, %c0_27] : memref<1x128xf32, #tpu.memory_space<vmem>>, vector<1x128xf32>
    %34 = vector.broadcast %33 : vector<1x128xf32> to vector<8x128xf32>
    %35 = arith.addf %32, %34 : vector<8x128xf32>
    %cst_28 = arith.constant 3.000000e+00 : f32
    %36 = vector.broadcast %cst_28 : f32 to vector<8x128xf32>
    %37 = arith.addf %35, %36 : vector<8x128xf32>
    %cst_29 = arith.constant 0.000000e+00 : f32
    %cst_30 = arith.constant 6.000000e+00 : f32
    %38 = vector.broadcast %cst_29 : f32 to vector<8x128xf32>
    %39 = arith.maximumf %38, %37 : vector<8x128xf32>
    %40 = vector.broadcast %cst_30 : f32 to vector<8x128xf32>
    %41 = arith.minimumf %40, %39 : vector<8x128xf32>
    %42 = arith.mulf %35, %41 : vector<8x128xf32>
    %cst_31 = arith.constant 0.166666672 : f32
    %43 = vector.broadcast %cst_31 : f32 to vector<8x128xf32>
    %44 = arith.mulf %42, %43 : vector<8x128xf32>
    %c0_32 = arith.constant 0 : index
    %c0_33 = arith.constant 0 : index
    %45 = vector.load %arg12[%c0_32, %c0_33] : memref<1x128xf32, #tpu.memory_space<vmem>>, vector<1x128xf32>
    %46 = vector.broadcast %45 : vector<1x128xf32> to vector<8x128xf32>
    %47 = arith.mulf %44, %46 : vector<8x128xf32>
    %cst_34 = arith.constant dense<0.000000e+00> : vector<8xf32>
    %48 = vector.multi_reduction <add>, %47, %cst_34 [1] : vector<8x128xf32> to vector<8xf32>
    %49 = vector.shape_cast %48 : vector<8xf32> to vector<8x1xf32>
    %c0_35 = arith.constant 0 : index
    %c0_36 = arith.constant 0 : index
    %50 = vector.load %arg13[%c0_35, %c0_36] : memref<1x1xf32, #tpu.memory_space<vmem>>, vector<1x1xf32>
    %51 = vector.broadcast %50 : vector<1x1xf32> to vector<8x1xf32>
    %52 = arith.addf %49, %51 : vector<8x1xf32>
    %c0_37 = arith.constant 0 : index
    %c0_38 = arith.constant 0 : index
    %53 = vector.load %arg14[%c0_37, %c0_38] : memref<8x1xf32, #tpu.memory_space<vmem>>, vector<8x1xf32>
    tpu.vector_store %arg14[%c0_37, %c0_38], %52 {strides = array<i32>} : memref<8x1xf32, #tpu.memory_space<vmem>>, vector<8x1xf32>,
    return
  }
  func.func @transform_0(%arg0: i32) -> (i32, i32) {
    %c0_i32 = arith.constant 0 : i32
    %c0_i32_0 = arith.constant 0 : i32
    return %arg0, %c0_i32 : i32, i32
  }
  func.func @transform_1(%arg0: i32) -> (i32, i32) {
    %c0_i32 = arith.constant 0 : i32
    %c0_i32_0 = arith.constant 0 : i32
    return %arg0, %c0_i32 : i32, i32
  }
  func.func @transform_2(%arg0: i32) -> (i32, i32) {
    %c0_i32 = arith.constant 0 : i32
    %c0_i32_0 = arith.constant 0 : i32
    %c0_i32_1 = arith.constant 0 : i32
    return %c0_i32, %c0_i32_0 : i32, i32
  }
  func.func @transform_3(%arg0: i32) -> (i32, i32) {
    %c0_i32 = arith.constant 0 : i32
    %c0_i32_0 = arith.constant 0 : i32
    %c0_i32_1 = arith.constant 0 : i32
    return %c0_i32, %c0_i32_0 : i32, i32
  }
  func.func @transform_4(%arg0: i32) -> (i32, i32) {
    %c0_i32 = arith.constant 0 : i32
    %c0_i32_0 = arith.constant 0 : i32
    %c0_i32_1 = arith.constant 0 : i32
    return %c0_i32, %c0_i32_0 : i32, i32
  }
  func.func @transform_5(%arg0: i32) -> (i32, i32) {
    %c0_i32 = arith.constant 0 : i32
    %c0_i32_0 = arith.constant 0 : i32
    %c0_i32_1 = arith.constant 0 : i32
    return %c0_i32, %c0_i32_0 : i32, i32
  }
  func.func @transform_6(%arg0: i32) -> (i32, i32) {
    %c0_i32 = arith.constant 0 : i32
    %c0_i32_0 = arith.constant 0 : i32
    %c0_i32_1 = arith.constant 0 : i32
    return %c0_i32, %c0_i32_0 : i32, i32
  }
  func.func @transform_7(%arg0: i32) -> (i32, i32) {
    %c0_i32 = arith.constant 0 : i32
    %c0_i32_0 = arith.constant 0 : i32
    %c0_i32_1 = arith.constant 0 : i32
    return %c0_i32, %c0_i32_0 : i32, i32
  }
  func.func @transform_8(%arg0: i32) -> (i32, i32) {
    %c0_i32 = arith.constant 0 : i32
    %c0_i32_0 = arith.constant 0 : i32
    %c0_i32_1 = arith.constant 0 : i32
    return %c0_i32, %c0_i32_0 : i32, i32
  }
  func.func @transform_9(%arg0: i32) -> (i32, i32) {
    %c0_i32 = arith.constant 0 : i32
    %c0_i32_0 = arith.constant 0 : i32
    %c0_i32_1 = arith.constant 0 : i32
    return %c0_i32, %c0_i32_0 : i32, i32
  }
  func.func @transform_10(%arg0: i32) -> (i32, i32) {
    %c0_i32 = arith.constant 0 : i32
    %c0_i32_0 = arith.constant 0 : i32
    %c0_i32_1 = arith.constant 0 : i32
    return %c0_i32, %c0_i32_0 : i32, i32
  }
  func.func @transform_11(%arg0: i32) -> (i32, i32) {
    %c0_i32 = arith.constant 0 : i32
    %c0_i32_0 = arith.constant 0 : i32
    %c0_i32_1 = arith.constant 0 : i32
    return %c0_i32, %c0_i32_0 : i32, i32
  }
  func.func @transform_12(%arg0: i32) -> (i32, i32) {
    %c0_i32 = arith.constant 0 : i32
    %c0_i32_0 = arith.constant 0 : i32
    %c0_i32_1 = arith.constant 0 : i32
    return %c0_i32, %c0_i32_0 : i32, i32
  }
  func.func @transform_13(%arg0: i32) -> (i32, i32) {
    %c0_i32 = arith.constant 0 : i32
    %c0_i32_0 = arith.constant 0 : i32
    return %arg0, %c0_i32 : i32, i32
  }
}

</mosaic_0001>

<llo_original>
// kernel: critic_twin_forward.1
$region0: #{critic_twin_forward.1}
  #allocation0 [shape = 'u32[]', space=smem, size = 0x4, offset = 0x4, fixed_abs, tag = 'smem constant byte address 0x4 - core index']
  #allocation1 [shape = 'u32[72,128]{1,0:T(1,128)}', space=vmem, size = 0x9000, scoped, tag = 'internal scratch']
  #allocation2 [shape = 'f32[1,1]{1,0:T(1,128)S(1)}', space=vmem, size = 0x200, scoped, tag = 'scoped memory for critic_twin_forward.1']
  %s0 = inlined_call_operand.vmem [shape: f32[8,12], index: 0, kind: input, shape index: {}]
  %s1 = inlined_call_operand.vmem [shape: f32[8,4], index: 1, kind: input, shape index: {}]
  %s2 = inlined_call_operand.vmem [shape: bf16[12,128], index: 2, kind: input, shape index: {}]
  %s3 = inlined_call_operand.vmem [shape: bf16[4,128], index: 3, kind: input, shape index: {}]
  %s4 = inlined_call_operand.hbm [shape: f32[1,128], index: 4, kind: input, shape index: {}]
  %s5 = inlined_call_operand.hbm [shape: bf16[128,128], index: 5, kind: input, shape index: {}]
  %s6 = inlined_call_operand.hbm [shape: f32[1,128], index: 6, kind: input, shape index: {}]
  %s7 = inlined_call_operand.hbm [shape: bf16[128,128], index: 7, kind: input, shape index: {}]
  %s8 = inlined_call_operand.hbm [shape: f32[1,128], index: 8, kind: input, shape index: {}]
  %s9 = inlined_call_operand.hbm [shape: bf16[128,128], index: 9, kind: input, shape index: {}]
  %s10 = inlined_call_operand.hbm [shape: f32[1,128], index: 10, kind: input, shape index: {}]
  %s11 = inlined_call_operand.vmem [shape: f32[1,128], index: 11, kind: input, shape index: {}]
  %s12 = inlined_call_operand.<no memory space> [shape: f32[1,1], index: 12, kind: input, shape index: {}]
  %s13 = inlined_call_operand.vmem [shape: f32[8,1], index: 13, kind: output, shape index: {}]
  %s14 = sld [smem:[#allocation0]]
  $region90: #{critic_twin_forward.1} parent=0
    _
  %s16 = ssub.s32 1, %s14
  %s17 = scalar_select 0, %s16, %s14
  %v18 = vstv %s12
  %19 = vst [vmem:[#allocation2] sm:$0x1] %v18
  $region1: #{critic_twin_forward.1} parent=0
    #allocation3 [shape = 'u8[512]{0}', space=vmem, size = 0x400, scoped, tag = 'input window, operand 4, single buffered']
    #allocation4 [shape = 's32[1]{0}', space=sflag, size = 0x4, scoped, tag = 'scoped memory for critic_twin_forward.1']
    #allocation5 [shape = 'u8[32768]{0}', space=vmem, size = 0x8000, scoped, tag = 'input window, operand 5, single buffered']
    #allocation6 [shape = 's32[1]{0}', space=sflag, size = 0x4, scoped, tag = 'scoped memory for critic_twin_forward.1']
    #allocation7 [shape = 'u8[512]{0}', space=vmem, size = 0x400, scoped, tag = 'input window, operand 6, single buffered']
    #allocation8 [shape = 'u8[32768]{0}', space=vmem, size = 0x8000, scoped, tag = 'input window, operand 7, single buffered']
    #allocation9 [shape = 's32[1]{0}', space=sflag, size = 0x4, scoped, tag = 'scoped memory for critic_twin_forward.1']
    #allocation10 [shape = 'u8[512]{0}', space=vmem, size = 0x400, scoped, tag = 'input window, operand 8, single buffered']
    #allocation11 [shape = 'u8[32768]{0}', space=vmem, size = 0x8000, scoped, tag = 'input window, operand 9, single buffered']
    #allocation12 [shape = 's32[1]{0}', space=sflag, size = 0x4, scoped, tag = 'scoped memory for critic_twin_forward.1']
    #allocation13 [shape = 'u8[512]{0}', space=vmem, size = 0x400, scoped, tag = 'input window, operand 10, single buffered']
    %20 = vsyncpa [#allocation4], 0
    %21 = vsyncpa [#allocation6], 0
    %22 = vsyncpa [#allocation9], 0
    %23 = vsyncpa [#allocation12], 0
    // Predicated region
    $region2: #{critic_twin_forward.1} parent=1 // pred_check
      _
    $region3: #{critic_twin_forward.1} parent=1 // pred_check_branch
      %25 = sbr.rel (0) target = $region5
    $region4: #{critic_twin_forward.1} parent=1 // pred_region
      _
    $region5: #{critic_twin_forward.1} parent=1 // pred_fallthru
      _
    // Predicated region
    $region6: #{critic_twin_forward.1} parent=1 // pred_check
      _
    $region7: #{critic_twin_forward.1} parent=1 // pred_check_branch
      %27 = sbr.rel (0) target = $region9
    $region8: #{critic_twin_forward.1} parent=1 // pred_region
      _
    $region9: #{critic_twin_forward.1} parent=1 // pred_fallthru
      _
    // Predicated region
    $region10: #{critic_twin_forward.1} parent=1 // pred_check
      _
    $region11: #{critic_twin_forward.1} parent=1 // pred_check_branch
      %29 = sbr.rel (0) target = $region13
    $region12: #{critic_twin_forward.1} parent=1 // pred_region
      _
    $region13: #{critic_twin_forward.1} parent=1 // pred_fallthru
      _
    // Predicated region
    $region14: #{critic_twin_forward.1} parent=1 // pred_check
      _
    $region15: #{critic_twin_forward.1} parent=1 // pred_check_branch
      %31 = sbr.rel (0) target = $region17
    $region16: #{critic_twin_forward.1} parent=1 // pred_region
      _
    $region17: #{critic_twin_forward.1} parent=1 // pred_fallthru
      _
    // Predicated region
    $region18: #{critic_twin_forward.1} parent=1 // pred_check
      _
    $region19: #{critic_twin_forward.1} parent=1 // pred_check_branch
      %33 = sbr.rel (0) target = $region21
    $region20: #{critic_twin_forward.1} parent=1 // pred_region
      %35 = vsyncadd [#allocation4], 0
      %s37 = sshll.u32 %s4, 4
      %s38 = int_to_ptr.hbm [resolvable:$true] %s37
      %s39 = sshll.u32 [#allocation3], 4
      %s40 = int_to_ptr.vmem [resolvable:$true] %s39
      %42 = dma.hbm_to_vmem [thread:$0]  %s38, 16, %s40, [#allocation4]
    $region21: #{critic_twin_forward.1} parent=1 // pred_fallthru
      _
    // Predicated region
    $region22: #{critic_twin_forward.1} parent=1 // pred_check
      _
    $region23: #{critic_twin_forward.1} parent=1 // pred_check_branch
      %44 = sbr.rel (0) target = $region25
    $region24: #{critic_twin_forward.1} parent=1 // pred_region
      %46 = vsyncadd [#allocation6], 0
      %s47 = sshll.u32 %s5, 4
      %s48 = int_to_ptr.hbm [resolvable:$true] %s47
      %s49 = sshll.u32 [#allocation5], 4
      %s50 = int_to_ptr.vmem [resolvable:$true] %s49
      %55 = dma.hbm_to_vmem [thread:$0]  %s48, 1024, %s50, [#allocation6], 64, 64, 4
    $region25: #{critic_twin_forward.1} parent=1 // pred_fallthru
      _
    // Predicated region
    $region26: #{critic_twin_forward.1} parent=1 // pred_check
      _
    $region27: #{critic_twin_forward.1} parent=1 // pred_check_branch
      %57 = sbr.rel (0) target = $region29
    $region28: #{critic_twin_forward.1} parent=1 // pred_region
      %59 = vsyncadd [#allocation6], 0
      %s61 = sshll.u32 %s6, 4
      %s62 = int_to_ptr.hbm [resolvable:$true] %s61
      %s63 = sshll.u32 [#allocation7], 4
      %s64 = int_to_ptr.vmem [resolvable:$true] %s63
      %66 = dma.hbm_to_vmem [thread:$0]  %s62, 16, %s64, [#allocation6]
    $region29: #{critic_twin_forward.1} parent=1 // pred_fallthru
      _
    // Predicated region
    $region30: #{critic_twin_forward.1} parent=1 // pred_check
      _
    $region31: #{critic_twin_forward.1} parent=1 // pred_check_branch
      %68 = sbr.rel (0) target = $region33
    $region32: #{critic_twin_forward.1} parent=1 // pred_region
      %70 = vsyncadd [#allocation9], 0
      %s71 = sshll.u32 %s7, 4
      %s72 = int_to_ptr.hbm [resolvable:$true] %s71
      %s73 = sshll.u32 [#allocation8], 4
      %s74 = int_to_ptr.vmem [resolvable:$true] %s73
      %79 = dma.hbm_to_vmem [thread:$0]  %s72, 1024, %s74, [#allocation9], 64, 64, 4
    $region33: #{critic_twin_forward.1} parent=1 // pred_fallthru
      _
    // Predicated region
    $region34: #{critic_twin_forward.1} parent=1 // pred_check
      _
    $region35: #{critic_twin_forward.1} parent=1 // pred_check_branch
      %81 = sbr.rel (0) target = $region37
    $region36: #{critic_twin_forward.1} parent=1 // pred_region
      %83 = vsyncadd [#allocation9], 0
      %s85 = sshll.u32 %s8, 4
      %s86 = int_to_ptr.hbm [resolvable:$true] %s85
      %s87 = sshll.u32 [#allocation10], 4
      %s88 = int_to_ptr.vmem [resolvable:$true] %s87
      %90 = dma.hbm_to_vmem [thread:$0]  %s86, 16, %s88, [#allocation9]
    $region37: #{critic_twin_forward.1} parent=1 // pred_fallthru
      _
    // Predicated region
    $region38: #{critic_twin_forward.1} parent=1 // pred_check
      _
    $region39: #{critic_twin_forward.1} parent=1 // pred_check_branch
      %92 = sbr.rel (0) target = $region41
    $region40: #{critic_twin_forward.1} parent=1 // pred_region
      %94 = vsyncadd [#allocation12], 0
      %s95 = sshll.u32 %s9, 4
      %s96 = int_to_ptr.hbm [resolvable:$true] %s95
      %s97 = sshll.u32 [#allocation11], 4
      %s98 = int_to_ptr.vmem [resolvable:$true] %s97
      %103 = dma.hbm_to_vmem [thread:$0]  %s96, 1024, %s98, [#allocation12], 64, 64, 4
    $region41: #{critic_twin_forward.1} parent=1 // pred_fallthru
      _
    // Predicated region
    $region42: #{critic_twin_forward.1} parent=1 // pred_check
      _
    $region43: #{critic_twin_forward.1} parent=1 // pred_check_branch
      %105 = sbr.rel (0) target = $region45
    $region44: #{critic_twin_forward.1} parent=1 // pred_region
      %107 = vsyncadd [#allocation12], 0
      %s109 = sshll.u32 %s10, 4
      %s110 = int_to_ptr.hbm [resolvable:$true] %s109
      %s111 = sshll.u32 [#allocation13], 4
      %s112 = int_to_ptr.vmem [resolvable:$true] %s111
      %114 = dma.hbm_to_vmem [thread:$0]  %s110, 16, %s112, [#allocation12]
    $region45: #{critic_twin_forward.1} parent=1 // pred_fallthru
      _
    // Predicated region
    $region46: #{critic_twin_forward.1} parent=1 // pred_check
      _
    $region47: #{critic_twin_forward.1} parent=1 // pred_check_branch
      %116 = sbr.rel (0) target = $region49
    $region48: #{critic_twin_forward.1} parent=1 // pred_region
      _
    $region49: #{critic_twin_forward.1} parent=1 // pred_fallthru
      _
    // Predicated region
    $region50: #{critic_twin_forward.1} parent=1 // pred_check
      _
    $region51: #{critic_twin_forward.1} parent=1 // pred_check_branch
      %118 = sbr.rel (0) target = $region53
    $region52: #{critic_twin_forward.1} parent=1 // pred_region
      _
    $region53: #{critic_twin_forward.1} parent=1 // pred_fallthru
      _
    // Predicated region
    $region54: #{critic_twin_forward.1} parent=1 // pred_check
      _
    $region55: #{critic_twin_forward.1} parent=1 // pred_check_branch
      %120 = sbr.rel (0) target = $region57
    $region56: #{critic_twin_forward.1} parent=1 // pred_region
      %122 = dma.done [#allocation4], 16
    $region57: #{critic_twin_forward.1} parent=1 // pred_fallthru
      _
    // Predicated region
    $region58: #{critic_twin_forward.1} parent=1 // pred_check
      _
    $region59: #{critic_twin_forward.1} parent=1 // pred_check_branch
      %124 = sbr.rel (0) target = $region61
    $region60: #{critic_twin_forward.1} parent=1 // pred_region
      %126 = dma.done [#allocation6], 1024
    $region61: #{critic_twin_forward.1} parent=1 // pred_fallthru
      _
    // Predicated region
    $region62: #{critic_twin_forward.1} parent=1 // pred_check
      _
    $region63: #{critic_twin_forward.1} parent=1 // pred_check_branch
      %128 = sbr.rel (0) target = $region65
    $region64: #{critic_twin_forward.1} parent=1 // pred_region
      %130 = dma.done [#allocation6], 16
    $region65: #{critic_twin_forward.1} parent=1 // pred_fallthru
      _
    // Predicated region
    $region66: #{critic_twin_forward.1} parent=1 // pred_check
      _
    $region67: #{critic_twin_forward.1} parent=1 // pred_check_branch
      %132 = sbr.rel (0) target = $region69
    $region68: #{critic_twin_forward.1} parent=1 // pred_region
      %134 = dma.done [#allocation9], 1024
    $region69: #{critic_twin_forward.1} parent=1 // pred_fallthru
      _
    // Predicated region
    $region70: #{critic_twin_forward.1} parent=1 // pred_check
      _
    $region71: #{critic_twin_forward.1} parent=1 // pred_check_branch
      %136 = sbr.rel (0) target = $region73
    $region72: #{critic_twin_forward.1} parent=1 // pred_region
      %138 = dma.done [#allocation9], 16
    $region73: #{critic_twin_forward.1} parent=1 // pred_fallthru
      _
    // Predicated region
    $region74: #{critic_twin_forward.1} parent=1 // pred_check
      _
    $region75: #{critic_twin_forward.1} parent=1 // pred_check_branch
      %140 = sbr.rel (0) target = $region77
    $region76: #{critic_twin_forward.1} parent=1 // pred_region
      %142 = dma.done [#allocation12], 1024
    $region77: #{critic_twin_forward.1} parent=1 // pred_fallthru
      _
    // Predicated region
    $region78: #{critic_twin_forward.1} parent=1 // pred_check
      _
    $region79: #{critic_twin_forward.1} parent=1 // pred_check_branch
      %144 = sbr.rel (0) target = $region81
    $region80: #{critic_twin_forward.1} parent=1 // pred_region
      %146 = dma.done [#allocation12], 16
    $region81: #{critic_twin_forward.1} parent=1 // pred_fallthru
      _
    %v148 = vld [vmem:[%s0] sm:$0xff]
    %v149 = vpack.c.bf16 %v148, %v148
    %v150 = vld [vmem:[%s1] sm:$0xff]
    %v151 = vpack.c.bf16 %v150, %v150
    %v152 = vld [vmem:[%s2] sm:$0xf]
    %v153 = vld [vmem:[%s2 + $0x4] sm:$0x3]
    %v154 = vld [vmem:[%s3] sm:$0x3]
    %vm155 = vcmask 31744
    %v157 = vsel %vm155, %v151, 0
    %vm159 = vcmask 1041408
    %v161 = vsel %vm159, %v154, 0
    %163 = vmatpush.bf16.msra.mxu0 0
    %164 = vmatpush.bf16.msra.mxu0 0
    %165 = vmatpush.bf16.msra.mxu0 0
    %166 = vmatpush.bf16.msra.mxu0 0
    %167 = vmatpush.bf16.msra.mxu0 0
    %168 = vmatpush.bf16.msra.mxu0 0
    %169 = vmatpush.bf16.msra.mxu0 0
    %170 = vmatpush.bf16.msra.mxu0 %v161
    %171 = vmatmul.bf16.gmra.mxu0 %v157
    %v172 = vpop.f32.mrf.mxu0
    %v173 = vadd.f32 0.0, %v172
    %v174 = vpop.f32.mrf.mxu0
    %175 = vdwg.mxu0
    %v178 = vunpack.c.l.b16 %v152
    %v179 = vunpack.c.l.b16 %v153
    %v180 = vpack.c.b16 %v179, %v178
    %vm181 = vcmask 97280
    %v183 = vsel %vm181, %v149, 0
    %vm185 = vcmask 1045504
    %v187 = vsel %vm185, %v180, 0
    %189 = vmatpush.bf16.msra.mxu0 0
    %190 = vmatpush.bf16.msra.mxu0 0
    %191 = vmatpush.bf16.msra.mxu0 0
    %192 = vmatpush.bf16.msra.mxu0 0
    %193 = vmatpush.bf16.msra.mxu0 0
    %194 = vmatpush.bf16.msra.mxu0 0
    %195 = vmatpush.bf16.msra.mxu0 0
    %196 = vmatpush.bf16.msra.mxu0 %v187
    %197 = vmatmul.bf16.gmra.mxu0 %v183
    %v198 = vpop.f32.mrf.mxu0
    %v199 = vadd.f32 %v173, %v198
    %v200 = vpop.f32.mrf.mxu0
    %201 = vdwg.mxu0
    %v202 = vld [vmem:[#allocation3] sm:$0x1]
    %v204 = vperm.slane %v202, 0
    %v206 = vadd.f32 %v199, %v204
    %v207 = vmax.f32 %v206, 0.0
    %v208 = vpack.c.bf16 %v207, %v207
    %v209 = vld [vmem:[#allocation5] sm:$0xf]
    %v210 = vld [vmem:[#allocation5 + $0x4] sm:$0xf]
    %v211 = vld [vmem:[#allocation5 + $0x8] sm:$0xf]
    %v212 = vld [vmem:[#allocation5 + $0xc] sm:$0xf]
    %v213 = vld [vmem:[#allocation5 + $0x10] sm:$0xf]
    %v214 = vld [vmem:[#allocation5 + $0x14] sm:$0xf]
    %v215 = vld [vmem:[#allocation5 + $0x18] sm:$0xf]
    %v216 = vld [vmem:[#allocation5 + $0x1c] sm:$0xf]
    %v217 = vld [vmem:[#allocation5 + $0x20] sm:$0xf]
    %v218 = vld [vmem:[#allocation5 + $0x24] sm:$0xf]
    %v219 = vld [vmem:[#allocation5 + $0x28] sm:$0xf]
    %v220 = vld [vmem:[#allocation5 + $0x2c] sm:$0xf]
    %v221 = vld [vmem:[#allocation5 + $0x30] sm:$0xf]
    %v222 = vld [vmem:[#allocation5 + $0x34] sm:$0xf]
    %v223 = vld [vmem:[#allocation5 + $0x38] sm:$0xf]
    %v224 = vld [vmem:[#allocation5 + $0x3c] sm:$0xf]
    %v225 = vld [vmem:[#allocation7] sm:$0x1]
    %v227 = vperm.slane %v225, 0
    %v245 = vunpack.c.l.b16 %v209
    %v246 = vunpack.c.l.b16 %v210
    %v247 = vunpack.c.l.b16 %v211
    %v248 = vunpack.c.l.b16 %v212
    %v249 = vunpack.c.l.b16 %v213
    %v250 = vunpack.c.l.b16 %v214
    %v251 = vunpack.c.l.b16 %v215
    %v252 = vunpack.c.l.b16 %v216
    %v253 = vunpack.c.l.b16 %v217
    %v254 = vunpack.c.l.b16 %v218
    %v255 = vunpack.c.l.b16 %v219
    %v256 = vunpack.c.l.b16 %v220
    %v257 = vunpack.c.l.b16 %v221
    %v258 = vunpack.c.l.b16 %v222
    %v259 = vunpack.c.l.b16 %v223
    %v260 = vunpack.c.l.b16 %v224
    %v261 = vpack.c.b16 %v246, %v245
    %v262 = vpack.c.b16 %v248, %v247
    %v263 = vpack.c.b16 %v250, %v249
    %v264 = vpack.c.b16 %v252, %v251
    %v265 = vpack.c.b16 %v254, %v253
    %v266 = vpack.c.b16 %v256, %v255
    %v267 = vpack.c.b16 %v258, %v257
    %v268 = vpack.c.b16 %v260, %v259
    %277 = vmatpush.bf16.msra.mxu0 %v268
    %278 = vmatpush.bf16.msra.mxu0 %v267
    %279 = vmatpush.bf16.msra.mxu0 %v266
    %280 = vmatpush.bf16.msra.mxu0 %v265
    %281 = vmatpush.bf16.msra.mxu0 %v264
    %282 = vmatpush.bf16.msra.mxu0 %v263
    %283 = vmatpush.bf16.msra.mxu0 %v262
    %284 = vmatpush.bf16.msra.mxu0 %v261
    %285 = vmatmul.bf16.gmra.mxu0 %v208
    %v286 = vpop.f32.mrf.mxu0
    %v287 = vadd.f32 %v227, %v286
    %v288 = vpop.f32.mrf.mxu0
    %289 = vdwg.mxu0
    %v290 = vmax.f32 %v287, 0.0
    %v291 = vpack.c.bf16 %v290, %v290
    %v292 = vld [vmem:[#allocation8] sm:$0xf]
    %v293 = vld [vmem:[#allocation8 + $0x4] sm:$0xf]
    %v294 = vld [vmem:[#allocation8 + $0x8] sm:$0xf]
    %v295 = vld [vmem:[#allocation8 + $0xc] sm:$0xf]
    %v296 = vld [vmem:[#allocation8 + $0x10] sm:$0xf]
    %v297 = vld [vmem:[#allocation8 + $0x14] sm:$0xf]
    %v298 = vld [vmem:[#allocation8 + $0x18] sm:$0xf]
    %v299 = vld [vmem:[#allocation8 + $0x1c] sm:$0xf]
    %v300 = vld [vmem:[#allocation8 + $0x20] sm:$0xf]
    %v301 = vld [vmem:[#allocation8 + $0x24] sm:$0xf]
    %v302 = vld [vmem:[#allocation8 + $0x28] sm:$0xf]
    %v303 = vld [vmem:[#allocation8 + $0x2c] sm:$0xf]
    %v304 = vld [vmem:[#allocation8 + $0x30] sm:$0xf]
    %v305 = vld [vmem:[#allocation8 + $0x34] sm:$0xf]
    %v306 = vld [vmem:[#allocation8 + $0x38] sm:$0xf]
    %v307 = vld [vmem:[#allocation8 + $0x3c] sm:$0xf]
    %v308 = vld [vmem:[#allocation10] sm:$0x1]
    %v310 = vperm.slane %v308, 0
    %v328 = vunpack.c.l.b16 %v292
    %v329 = vunpack.c.l.b16 %v293
    %v330 = vunpack.c.l.b16 %v294
    %v331 = vunpack.c.l.b16 %v295
    %v332 = vunpack.c.l.b16 %v296
    %v333 = vunpack.c.l.b16 %v297
    %v334 = vunpack.c.l.b16 %v298
    %v335 = vunpack.c.l.b16 %v299
    %v336 = vunpack.c.l.b16 %v300
    %v337 = vunpack.c.l.b16 %v301
    %v338 = vunpack.c.l.b16 %v302
    %v339 = vunpack.c.l.b16 %v303
    %v340 = vunpack.c.l.b16 %v304
    %v341 = vunpack.c.l.b16 %v305
    %v342 = vunpack.c.l.b16 %v306
    %v343 = vunpack.c.l.b16 %v307
    %v344 = vpack.c.b16 %v329, %v328
    %v345 = vpack.c.b16 %v331, %v330
    %v346 = vpack.c.b16 %v333, %v332
    %v347 = vpack.c.b16 %v335, %v334
    %v348 = vpack.c.b16 %v337, %v336
    %v349 = vpack.c.b16 %v339, %v338
    %v350 = vpack.c.b16 %v341, %v340
    %v351 = vpack.c.b16 %v343, %v342
    %360 = vmatpush.bf16.msra.mxu0 %v351
    %361 = vmatpush.bf16.msra.mxu0 %v350
    %362 = vmatpush.bf16.msra.mxu0 %v349
    %363 = vmatpush.bf16.msra.mxu0 %v348
    %364 = vmatpush.bf16.msra.mxu0 %v347
    %365 = vmatpush.bf16.msra.mxu0 %v346
    %366 = vmatpush.bf16.msra.mxu0 %v345
    %367 = vmatpush.bf16.msra.mxu0 %v344
    %368 = vmatmul.bf16.gmra.mxu0 %v291
    %v369 = vpop.f32.mrf.mxu0
    %v370 = vadd.f32 %v310, %v369
    %v371 = vpop.f32.mrf.mxu0
    %372 = vdwg.mxu0
    %v373 = vmax.f32 %v370, 0.0
    %v374 = vpack.c.bf16 %v373, %v373
    %v375 = vld [vmem:[#allocation11] sm:$0xf]
    %v376 = vld [vmem:[#allocation11 + $0x4] sm:$0xf]
    %v377 = vld [vmem:[#allocation11 + $0x8] sm:$0xf]
    %v378 = vld [vmem:[#allocation11 + $0xc] sm:$0xf]
    %v379 = vld [vmem:[#allocation11 + $0x10] sm:$0xf]
    %v380 = vld [vmem:[#allocation11 + $0x14] sm:$0xf]
    %v381 = vld [vmem:[#allocation11 + $0x18] sm:$0xf]
    %v382 = vld [vmem:[#allocation11 + $0x1c] sm:$0xf]
    %v383 = vld [vmem:[#allocation11 + $0x20] sm:$0xf]
    %v384 = vld [vmem:[#allocation11 + $0x24] sm:$0xf]
    %v385 = vld [vmem:[#allocation11 + $0x28] sm:$0xf]
    %v386 = vld [vmem:[#allocation11 + $0x2c] sm:$0xf]
    %v387 = vld [vmem:[#allocation11 + $0x30] sm:$0xf]
    %v388 = vld [vmem:[#allocation11 + $0x34] sm:$0xf]
    %v389 = vld [vmem:[#allocation11 + $0x38] sm:$0xf]
    %v390 = vld [vmem:[#allocation11 + $0x3c] sm:$0xf]
    %v391 = vld [vmem:[#allocation13] sm:$0x1]
    %v393 = vperm.slane %v391, 0
    %v411 = vunpack.c.l.b16 %v375
    %v412 = vunpack.c.l.b16 %v376
    %v413 = vunpack.c.l.b16 %v377
    %v414 = vunpack.c.l.b16 %v378
    %v415 = vunpack.c.l.b16 %v379
    %v416 = vunpack.c.l.b16 %v380
    %v417 = vunpack.c.l.b16 %v381
    %v418 = vunpack.c.l.b16 %v382
    %v419 = vunpack.c.l.b16 %v383
    %v420 = vunpack.c.l.b16 %v384
    %v421 = vunpack.c.l.b16 %v385
    %v422 = vunpack.c.l.b16 %v386
    %v423 = vunpack.c.l.b16 %v387
    %v424 = vunpack.c.l.b16 %v388
    %v425 = vunpack.c.l.b16 %v389
    %v426 = vunpack.c.l.b16 %v390
    %v427 = vpack.c.b16 %v412, %v411
    %v428 = vpack.c.b16 %v414, %v413
    %v429 = vpack.c.b16 %v416, %v415
    %v430 = vpack.c.b16 %v418, %v417
    %v431 = vpack.c.b16 %v420, %v419
    %v432 = vpack.c.b16 %v422, %v421
    %v433 = vpack.c.b16 %v424, %v423
    %v434 = vpack.c.b16 %v426, %v425
    %443 = vmatpush.bf16.msra.mxu0 %v434
    %444 = vmatpush.bf16.msra.mxu0 %v433
    %445 = vmatpush.bf16.msra.mxu0 %v432
    %446 = vmatpush.bf16.msra.mxu0 %v431
    %447 = vmatpush.bf16.msra.mxu0 %v430
    %448 = vmatpush.bf16.msra.mxu0 %v429
    %449 = vmatpush.bf16.msra.mxu0 %v428
    %450 = vmatpush.bf16.msra.mxu0 %v427
    %451 = vmatmul.bf16.gmra.mxu0 %v374
    %v452 = vpop.f32.mrf.mxu0
    %v453 = vadd.f32 %v393, %v452
    %v454 = vpop.f32.mrf.mxu0
    %455 = vdwg.mxu0
    %v456 = vadd.f32 %v453, 3.0
    %v457 = vmax.f32 %v456, 0.0
    %v458 = vmin.f32 %v457, 6.0
    %v459 = vmul.f32 %v453, %v458
    %v460 = vmul.f32 %v459, 0.16666667
    %v461 = vld [vmem:[%s11] sm:$0x1]
    %v463 = vperm.slane %v461, 0
    %v465 = vmul.f32 %v460, %v463
    %466 = vadd.xlane.f32.xlu0 %v465
    %v467 = vpop.xlane.xlu0 %466
    %v468 = vld [vmem:[#allocation2] sm:$0x1]
    %v470 = vperm.slane %v468, 0
    %v472 = vadd.f32 %v467, %v470
    %vm473 = vcmask 7168
    %474 = vst.msk [vmem:[%s13] sm:$0xff] %vm473, %v472
    // Predicated region
    $region82: #{critic_twin_forward.1} parent=1 // pred_check
      _
    $region83: #{critic_twin_forward.1} parent=1 // pred_check_branch
      %476 = sbr.rel (0) target = $region85
    $region84: #{critic_twin_forward.1} parent=1 // pred_region
      _
    $region85: #{critic_twin_forward.1} parent=1 // pred_fallthru
      _
    // Predicated region
    $region86: #{critic_twin_forward.1} parent=1 // pred_check
      _
    $region87: #{critic_twin_forward.1} parent=1 // pred_check_branch
      %478 = sbr.rel (0) target = $region89
    $region88: #{critic_twin_forward.1} parent=1 // pred_region
      _
    $region89: #{critic_twin_forward.1} parent=1 // pred_fallthru
      _
    %479 = vsyncpa [#allocation4], 1
    %480 = vsyncpa [#allocation6], 1
    %481 = vsyncpa [#allocation9], 1
    %482 = vsyncpa [#allocation12], 1

</llo_original>
